<compile_context>
chip_gen: v7x
topology: tpu7x:2x2x1
jax: 0.10.0
libtpu: 0.0.40
codegen_flags: <defaults>
</compile_context>

<pallas_src>
import jax
import jax.numpy as jnp
from jax import lax
from jax.experimental import pallas as pl
from jax.experimental.pallas import tpu as pltpu

# ----------------------------- config (small, synthetic) ---------------------
IN_CHANNELS  = 64     # roi feature dim (num_inputs)
HIDDEN_DIM   = 32     # CONTEXT_HIDDEN_DIM
POOLING_DIM  = 128    # CONTEXT_POOLING_DIM
MLP_HEAD_DIM = 64     # ROI_BOX_HEAD.MLP_HEAD_DIM (!= POOLING_DIM -> up_dim used)
NUM_OBJ_CLS  = 16
NUM_REL_CLS  = 32

EDGE_DIM  = 2 * HIDDEN_DIM          # 64 : post_emb output width (head|tail)
CTX_W     = 128                     # context-kernel output lanes: [edge_pre|obj|0]
OBJ_OFF   = EDGE_DIM                # obj_dists live in lanes [64, 80)
PROJ_W    = 2 * POOLING_DIM         # 256: [proj_h | proj_t] bf16 slab
REL_PAD_W = 128                     # lane-dense rel-dists output
FREQ_ROWS = NUM_OBJ_CLS * NUM_OBJ_CLS

assert OBJ_OFF + NUM_OBJ_CLS <= CTX_W
assert NUM_REL_CLS <= REL_PAD_W
assert POOLING_DIM == 128 and MLP_HEAD_DIM == 64

VMEM_LIMIT = 32 * 1024 * 1024   # explicit scoped-VMEM budget (safe on v5e/v6e/v7x)


def _round_up(x, m):
    return ((x + m - 1) // m) * m


# ----------------------------- Pallas kernels --------------------------------
def _context_kernel(roi_ref, w1_ref, b1_ref, wpc_ref, bpc_ref, ctx_ref, proj_ref):
    """Fused context: one matmul -> [edge_pre | obj_dists], relu, post_cat proj.

    roi_ref : (TN, IN_CHANNELS) bf16
    w1_ref  : (IN_CHANNELS, 128) bf16   cols [ w_edge@w_pe | w_obj | 0 ]
    b1_ref  : (1, 128) f32              lanes [ b_edge@w_pe+b_pe | b_obj | 0 ]
    wpc_ref : (128, 256) bf16           rows 0:32 -> proj_h cols, 32:64 -> proj_t cols
    bpc_ref : (1, 256) f32              [ b_pc | 0 ] (folded into proj_h)
    ctx_ref : (TN, 128) f32             raw y (obj_dists at lanes 64:80)
    proj_ref: (TN, 256) bf16            [ proj_h | proj_t ]
    """
    y = jnp.dot(roi_ref[...], w1_ref[...],
                preferred_element_type=jnp.float32) + b1_ref[...]       # (TN,128)
    ctx_ref[...] = y
    edge_relu = jnp.maximum(y, 0.0).astype(jnp.bfloat16)                # (TN,128)
    proj = jnp.dot(edge_relu, wpc_ref[...],
                   preferred_element_type=jnp.float32) + bpc_ref[...]   # (TN,256)
    proj_ref[...] = proj.astype(jnp.bfloat16)


def _rel_head_kernel(idx_ref, proj_ref, union_ref, frq_ref,
                     wup_ref, bup_ref, wcc_ref, out_ref):
    """Fused relation head with in-kernel gathers (lane-dense one-hot MXU matmuls).

    idx_ref  : (TR, 2) int32 -> [head_idx, tail_idx] (global object indices)
    proj_ref : (N_pad, 256) bf16 pinned context slab [proj_h | proj_t]
    union_ref: (TR, MLP_HEAD_DIM) bf16
    frq_ref  : (TR, 128) f32 pre-gathered frequency bias (+ b_cc), streamed
    wup_ref  : (MLP_HEAD_DIM, 128) bf16 up_dim weight
    bup_ref  : (1, 128) f32 up_dim bias
    wcc_ref  : (128, 128) bf16 ctx_compress weight (lane-padded)
    out_ref  : (TR, 128) f32, rel logits in cols [0, NUM_REL_CLS)
    """
    tr = idx_ref.shape[0]
    n_pad = proj_ref.shape[0]

    idx = idx_ref[...]
    h_idx = idx[:, 0:1]
    t_idx = idx[:, 1:2]

    # one-hot gathers of the (already post_cat-projected) head/tail reps
    iota = lax.broadcasted_iota(jnp.int32, (tr, n_pad), 1)
    oh_h = jnp.where(iota == h_idx, 1.0, 0.0).astype(jnp.bfloat16)
    oh_t = jnp.where(iota == t_idx, 1.0, 0.0).astype(jnp.bfloat16)

    proj = proj_ref[...]                                                # bf16
    prod = (jnp.dot(oh_h, proj[:, 0:POOLING_DIM],
                    preferred_element_type=jnp.float32) +
            jnp.dot(oh_t, proj[:, POOLING_DIM:PROJ_W],
                    preferred_element_type=jnp.float32))                # (TR,128)

    uni = jnp.dot(union_ref[...], wup_ref[...],
                  preferred_element_type=jnp.float32) + bup_ref[...]    # (TR,128)

    gated = (prod * uni).astype(jnp.bfloat16)                           # (TR,128)
    ctx = jnp.dot(gated, wcc_ref[...], preferred_element_type=jnp.float32)

    # frequency bias (and b_cc) pre-gathered by XLA in the wrapper: plain VPU add
    out_ref[...] = ctx + frq_ref[...]


# ----------------------------- kernel wrappers --------------------------------
def pallas_context(prep, roi_features):
    n = roi_features.shape[0]
    tn = min(128, _round_up(n, 16))
    n_pad = _round_up(n, tn)
    roi = jnp.pad(roi_features, ((0, n_pad - n), (0, 0))).astype(jnp.bfloat16)
    w1, b1 = prep["w1_b16"], prep["b1_f32"]
    wpc, bpc = prep["wpc_b16"], prep["bpc_f32"]
    ctx, proj = pl.pallas_call(
        _context_kernel,
        out_shape=(jax.ShapeDtypeStruct((n_pad, CTX_W), jnp.float32),
                   jax.ShapeDtypeStruct((n_pad, PROJ_W), jnp.bfloat16)),
        grid=(n_pad // tn,),
        in_specs=[
            pl.BlockSpec((tn, IN_CHANNELS), lambda i: (i, 0)),
            pl.BlockSpec(w1.shape, lambda i: (0, 0)),
            pl.BlockSpec(b1.shape, lambda i: (0, 0)),
            pl.BlockSpec(wpc.shape, lambda i: (0, 0)),
            pl.BlockSpec(bpc.shape, lambda i: (0, 0)),
        ],
        out_specs=(pl.BlockSpec((tn, CTX_W), lambda i: (i, 0)),
                   pl.BlockSpec((tn, PROJ_W), lambda i: (i, 0))),
        compiler_params=pltpu.CompilerParams(
            dimension_semantics=("parallel",),
            vmem_limit_bytes=VMEM_LIMIT),
    )(roi, w1, b1, wpc, bpc)
    return ctx, proj


def pallas_rel_head(prep, proj_slab, pair_idx, union_features, freq_rows):
    r = pair_idx.shape[0]
    tr = min(128, _round_up(r, 16))
    r_pad = _round_up(r, tr)
    idx = jnp.pad(pair_idx.astype(jnp.int32), ((0, r_pad - r), (0, 0)))
    union = jnp.pad(union_features, ((0, r_pad - r), (0, 0))).astype(jnp.bfloat16)
    frq = jnp.pad(freq_rows, ((0, r_pad - r), (0, 0)))
    n_pad = proj_slab.shape[0]
    wup, bup, wcc = prep["wup_b16"], prep["bup_f32"], prep["wcc_b16"]
    return pl.pallas_call(
        _rel_head_kernel,
        out_shape=jax.ShapeDtypeStruct((r_pad, REL_PAD_W), jnp.float32),
        grid=(r_pad // tr,),
        in_specs=[
            pl.BlockSpec((tr, 2), lambda i: (i, 0)),
            pl.BlockSpec((n_pad, PROJ_W), lambda i: (0, 0)),   # pinned bf16 slab
            pl.BlockSpec((tr, MLP_HEAD_DIM), lambda i: (i, 0)),
            pl.BlockSpec((tr, REL_PAD_W), lambda i: (i, 0)),
            pl.BlockSpec(wup.shape, lambda i: (0, 0)),
            pl.BlockSpec(bup.shape, lambda i: (0, 0)),
            pl.BlockSpec(wcc.shape, lambda i: (0, 0)),
        ],
        out_specs=pl.BlockSpec((tr, REL_PAD_W), lambda i: (i, 0)),
        compiler_params=pltpu.CompilerParams(
            dimension_semantics=("parallel",),
            vmem_limit_bytes=VMEM_LIMIT),
    )(idx, proj_slab, union, frq, wup, bup, wcc)


# ----------------------------- parameters -------------------------------------
def init_params(key):
    ks = jax.random.split(key, 8)

    def xavier(k, shape):
        fan_in, fan_out = shape
        lim = (6.0 / (fan_in + fan_out)) ** 0.5
        return jax.random.uniform(k, shape, jnp.float32, -lim, lim)

    return {
        # simplified context layer (stand-in for VCTreeLSTMContext)
        "w_obj":  xavier(ks[0], (IN_CHANNELS, NUM_OBJ_CLS)),
        "b_obj":  jnp.zeros((NUM_OBJ_CLS,), jnp.float32),
        "w_edge": xavier(ks[1], (IN_CHANNELS, HIDDEN_DIM)),
        "b_edge": jnp.zeros((HIDDEN_DIM,), jnp.float32),
        # post_emb: normal init, std = 10 * sqrt(1/hidden_dim)
        "w_pe":   jax.random.normal(ks[2], (HIDDEN_DIM, EDGE_DIM), jnp.float32)
                  * (10.0 * (1.0 / HIDDEN_DIM) ** 0.5),
        "b_pe":   jnp.zeros((EDGE_DIM,), jnp.float32),
        # post_cat / ctx_compress / up_dim: xavier (post_cat has NO ReLU per spec)
        "w_pc":   xavier(ks[3], (EDGE_DIM, POOLING_DIM)),
        "b_pc":   jnp.zeros((POOLING_DIM,), jnp.float32),
        "w_cc":   xavier(ks[4], (POOLING_DIM, NUM_REL_CLS)),
        "b_cc":   jnp.zeros((NUM_REL_CLS,), jnp.float32),
        "w_up":   xavier(ks[5], (MLP_HEAD_DIM, POOLING_DIM)),
        "b_up":   jnp.zeros((POOLING_DIM,), jnp.float32),
        # frequency bias embedding table: (num_obj_cls^2, num_rel_cls)
        "freq":   jax.random.normal(ks[6], (FREQ_ROWS, NUM_REL_CLS),
                                    jnp.float32) * 0.01,
    }


def prepare_params(raw):
    """Compose / lane-pad weights host-side; pre-cast MXU operands to bf16."""
    f32, bf16 = jnp.float32, jnp.bfloat16

    # single composed context matmul: cols [ w_edge@w_pe (64) | w_obj (16) | 0 ]
    w_edge_pre = raw["w_edge"] @ raw["w_pe"]                       # (64, 64)
    b_edge_pre = raw["b_edge"] @ raw["w_pe"] + raw["b_pe"]         # (64,)
    w1 = jnp.zeros((IN_CHANNELS, CTX_W), f32)
    w1 = w1.at[:, 0:EDGE_DIM].set(w_edge_pre)
    w1 = w1.at[:, OBJ_OFF:OBJ_OFF + NUM_OBJ_CLS].set(raw["w_obj"])
    b1 = jnp.zeros((1, CTX_W), f32)
    b1 = b1.at[0, 0:EDGE_DIM].set(b_edge_pre)
    b1 = b1.at[0, OBJ_OFF:OBJ_OFF + NUM_OBJ_CLS].set(raw["b_obj"])

    # post_cat folded into the context kernel, K padded to 128 (rows 64:128 zero)
    # so no sub-128 lane slice is needed: edge_relu(128) @ wpc -> [proj_h | proj_t]
    wpc = jnp.zeros((CTX_W, PROJ_W), f32)
    wpc = wpc.at[0:HIDDEN_DIM, 0:POOLING_DIM].set(raw["w_pc"][0:HIDDEN_DIM])
    wpc = wpc.at[HIDDEN_DIM:EDGE_DIM, POOLING_DIM:PROJ_W].set(
        raw["w_pc"][HIDDEN_DIM:EDGE_DIM])
    bpc = jnp.zeros((1, PROJ_W), f32).at[0, 0:POOLING_DIM].set(raw["b_pc"])

    # up_dim
    wup = raw["w_up"]                                              # (64, 128)
    bup = raw["b_up"].reshape(1, POOLING_DIM)

    # ctx_compress with lane-padded output columns (bias folded into freq table)
    wcc = jnp.zeros((POOLING_DIM, REL_PAD_W), f32)
    wcc = wcc.at[:, :NUM_REL_CLS].set(raw["w_cc"])

    # frequency-bias table, lane-padded, with ctx_compress bias folded in;
    # gathered by XLA in the wrapper (kernel only adds it).
    frq = jnp.zeros((FREQ_ROWS, REL_PAD_W), f32)
    frq = frq.at[:, :NUM_REL_CLS].set(raw["freq"] + raw["b_cc"][None, :])

    return {
        "w1_b16": w1.astype(bf16), "b1_f32": b1,
        "wpc_b16": wpc.astype(bf16), "bpc_f32": bpc,
        "wup_b16": wup.astype(bf16), "bup_f32": bup,
        "wcc_b16": wcc.astype(bf16),
        "freq_bias_f32": frq,
    }


# ----------------------------- forward (JAX glue + Pallas hot path) ----------
def _build_pair_indices(rel_pair_idxs, num_objs):
    offsets, off = [], 0
    for n in num_objs:
        offsets.append(off)
        off += n
    head_idx = jnp.concatenate(
        [p[:, 0].astype(jnp.int32) + o for p, o in zip(rel_pair_idxs, offsets)], axis=0)
    tail_idx = jnp.concatenate(
        [p[:, 1].astype(jnp.int32) + o for p, o in zip(rel_pair_idxs, offsets)], axis=0)
    return head_idx, tail_idx


def vctree_predictor_forward(prep, roi_features, union_features,
                             rel_pair_idxs, num_objs):
    """Mirrors VCTreePredictor.forward (eval mode)."""
    num_rels = [int(p.shape[0]) for p in rel_pair_idxs]
    assert len(num_rels) == len(num_objs)
    n_obj = roi_features.shape[0]
    n_rel = union_features.shape[0]

    # ---- fused context kernel: obj_dists slab + post_cat-projected edge reps
    ctx_slab, proj_slab = pallas_context(prep, roi_features)
    obj_dists = ctx_slab[:n_obj, OBJ_OFF:OBJ_OFF + NUM_OBJ_CLS]     # (N, 16)
    obj_preds = jnp.argmax(obj_dists[:, 1:], axis=-1).astype(jnp.int32) + 1

    # ---- tiny integer glue: pair indices + XLA frequency-bias gather
    head_idx, tail_idx = _build_pair_indices(rel_pair_idxs, num_objs)
    flat_idx = (obj_preds[head_idx] * NUM_OBJ_CLS
                + obj_preds[tail_idx]).astype(jnp.int32)
    freq_rows = prep["freq_bias_f32"][flat_idx]                     # (R, 128) f32
    pair_idx = jnp.stack([head_idx, tail_idx], axis=-1)             # (R, 2)

    # ---- fused relation head (in-kernel gathers + up_dim + gate + compress)
    # NOTE: padded relation rows gather object 0 / freq-zero rows -> garbage
    # logits beyond row n_rel; they are sliced off here and never reduced over.
    rel_all = pallas_rel_head(prep, proj_slab, pair_idx, union_features, freq_rows)
    rel_dists = rel_all[:n_rel, :NUM_REL_CLS]

    obj_dists_list, rel_dists_list = [], []
    o = 0
    for n in num_objs:
        obj_dists_list.append(obj_dists[o:o + n]); o += n
    r = 0
    for n in num_rels:
        rel_dists_list.append(rel_dists[r:r + n]); r += n
    return obj_dists_list, rel_dists_list, {}


# ----------------------------- pure-JAX reference (bf16-matched) -------------
def _reference(raw, roi, union, head_idx, tail_idx, flat_idx):
    bf = jnp.bfloat16
    dot = lambda a, b: jnp.dot(a, b, preferred_element_type=jnp.float32)
    roi_b = roi.astype(bf)
    obj = dot(roi_b, raw["w_obj"].astype(bf)) + raw["b_obj"]
    edge_ctx = dot(roi_b, raw["w_edge"].astype(bf)) + raw["b_edge"]
    edge_rep = jnp.maximum(
        dot(edge_ctx.astype(bf), raw["w_pe"].astype(bf)) + raw["b_pe"], 0.0)
    head = edge_rep[:, :HIDDEN_DIM]
    tail = edge_rep[:, HIDDEN_DIM:]
    pair = jnp.concatenate([head[head_idx], tail[tail_idx]], axis=-1).astype(bf)
    prod = dot(pair, raw["w_pc"].astype(bf)) + raw["b_pc"]
    uni = dot(union.astype(bf), raw["w_up"].astype(bf)) + raw["b_up"]
    gated = (prod * uni).astype(bf)
    ctx = dot(gated, raw["w_cc"].astype(bf)) + raw["b_cc"]
    return obj, ctx + raw["freq"][flat_idx]


# ----------------------------- main -------------------------------------------
if __name__ == "__main__":
    key = jax.random.PRNGKey(0)
    kp, k1, k2, k3 = jax.random.split(key, 4)

    raw = init_params(kp)
    prep = prepare_params(raw)

    num_objs = [5, 7]                       # 2 images
    num_rels = [6, 10]
    n_obj_total = sum(num_objs)
    n_rel_total = sum(num_rels)

    roi_features = jax.random.normal(k1, (n_obj_total, IN_CHANNELS), jnp.float32)
    union_features = jax.random.normal(k2, (n_rel_total, MLP_HEAD_DIM), jnp.float32)

    rel_pair_idxs = []
    kk = k3
    for n_o, n_r in zip(num_objs, num_rels):
        kk, ka, kb = jax.random.split(kk, 3)
        subj = jax.random.randint(ka, (n_r,), 0, n_o, jnp.int32)
        obj = jax.random.randint(kb, (n_r,), 0, n_o, jnp.int32)
        rel_pair_idxs.append(jnp.stack([subj, obj], axis=1))

    obj_dists, rel_dists, add_losses = vctree_predictor_forward(
        prep, roi_features, union_features, rel_pair_idxs, num_objs)
    for t in obj_dists + rel_dists:
        jax.block_until_ready(t)

    # shape sanity
    assert [t.shape for t in obj_dists] == [(5, NUM_OBJ_CLS), (7, NUM_OBJ_CLS)]
    assert [t.shape for t in rel_dists] == [(6, NUM_REL_CLS), (10, NUM_REL_CLS)]

    # numerical sanity vs a bf16-matched pure-JAX reference (same obj_preds path)
    obj_cat = jnp.concatenate(obj_dists, axis=0)
    rel_cat = jnp.concatenate(rel_dists, axis=0)
    obj_preds = jnp.argmax(obj_cat[:, 1:], axis=-1).astype(jnp.int32) + 1
    h_idx, t_idx = _build_pair_indices(rel_pair_idxs, num_objs)
    f_idx = obj_preds[h_idx] * NUM_OBJ_CLS + obj_preds[t_idx]
    obj_ref, rel_ref = _reference(raw, roi_features, union_features,
                                  h_idx, t_idx, f_idx)
    scale_o = float(jnp.max(jnp.abs(obj_ref))) + 1.0
    scale_r = float(jnp.max(jnp.abs(rel_ref))) + 1.0
    assert float(jnp.max(jnp.abs(obj_cat - obj_ref))) <= 0.05 * scale_o
    assert float(jnp.max(jnp.abs(rel_cat - rel_ref))) <= 0.05 * scale_r

    print("KERNEL_OK")
</pallas_src>

<mosaic_0001>
module attributes {stable_mosaic.version = 11 : i64} {
  func.func @_context_kernel(%arg0: i32, %arg1: memref<16x64xbf16, #tpu.memory_space<vmem>>, %arg2: memref<64x128xbf16, #tpu.memory_space<vmem>>, %arg3: memref<1x128xf32, #tpu.memory_space<vmem>>, %arg4: memref<128x256xbf16, #tpu.memory_space<vmem>>, %arg5: memref<1x256xf32, #tpu.memory_space<vmem>>, %arg6: memref<16x128xf32, #tpu.memory_space<vmem>>, %arg7: memref<16x256xbf16, #tpu.memory_space<vmem>>) attributes {dimension_semantics = [#tpu.dimension_semantics<parallel>], iteration_bounds = array<i64: 1>, scalar_prefetch = 0 : i64, scratch_operands = 0 : i64, tpu.core_type = #tpu.core_type<tc>, window_params = [{transform_indices = @transform_0, window_bounds = array<i64: 16, 64>}, {pipeline_mode = #tpu.pipeline_mode<synchronous>, transform_indices = @transform_1, window_bounds = array<i64: 64, 128>}, {pipeline_mode = #tpu.pipeline_mode<synchronous>, transform_indices = @transform_2, window_bounds = array<i64: 1, 128>}, {pipeline_mode = #tpu.pipeline_mode<synchronous>, transform_indices = @transform_3, window_bounds = array<i64: 128, 256>}, {pipeline_mode = #tpu.pipeline_mode<synchronous>, transform_indices = @transform_4, window_bounds = array<i64: 1, 256>}, {transform_indices = @transform_5, window_bounds = array<i64: 16, 128>}, {transform_indices = @transform_6, window_bounds = array<i64: 16, 256>}]} {
    %c0 = arith.constant 0 : index
    %c0_0 = arith.constant 0 : index
    %0 = vector.load %arg1[%c0, %c0_0] : memref<16x64xbf16, #tpu.memory_space<vmem>>, vector<16x64xbf16>
    %c0_1 = arith.constant 0 : index
    %c0_2 = arith.constant 0 : index
    %1 = vector.load %arg2[%c0_1, %c0_2] : memref<64x128xbf16, #tpu.memory_space<vmem>>, vector<64x128xbf16>
    %cst = arith.constant dense<0.000000e+00> : vector<16x128xf32>
    %2 = tpu.matmul %0, %1, %cst {dimension_numbers = #tpu.dot_dimension_numbers<[1], [0], [0], [1], [0, 0, 1, 1], [], []>} : vector<16x64xbf16>, vector<64x128xbf16>, vector<16x128xf32> -> vector<16x128xf32>
    %c0_3 = arith.constant 0 : index
    %c0_4 = arith.constant 0 : index
    %3 = vector.load %arg3[%c0_3, %c0_4] : memref<1x128xf32, #tpu.memory_space<vmem>>, vector<1x128xf32>
    %4 = vector.broadcast %3 : vector<1x128xf32> to vector<16x128xf32>
    %5 = arith.addf %2, %4 : vector<16x128xf32>
    %c0_5 = arith.constant 0 : index
    %c0_6 = arith.constant 0 : index
    %6 = vector.load %arg6[%c0_5, %c0_6] : memref<16x128xf32, #tpu.memory_space<vmem>>, vector<16x128xf32>
    tpu.vector_store %arg6[%c0_5, %c0_6], %5 {strides = array<i32>} : memref<16x128xf32, #tpu.memory_space<vmem>>, vector<16x128xf32>,
    %cst_7 = arith.constant 0.000000e+00 : f32
    %7 = vector.broadcast %cst_7 : f32 to vector<16x128xf32>
    %8 = arith.maximumf %5, %7 : vector<16x128xf32>
    %9 = arith.truncf %8 : vector<16x128xf32> to vector<16x128xbf16>
    %c0_8 = arith.constant 0 : index
    %c0_9 = arith.constant 0 : index
    %10 = vector.load %arg4[%c0_8, %c0_9] : memref<128x256xbf16, #tpu.memory_space<vmem>>, vector<128x256xbf16>
    %cst_10 = arith.constant dense<0.000000e+00> : vector<16x256xf32>
    %11 = tpu.matmul %9, %10, %cst_10 {dimension_numbers = #tpu.dot_dimension_numbers<[1], [0], [0], [1], [0, 0, 1, 1], [], []>} : vector<16x128xbf16>, vector<128x256xbf16>, vector<16x256xf32> -> vector<16x256xf32>
    %c0_11 = arith.constant 0 : index
    %c0_12 = arith.constant 0 : index
    %12 = vector.load %arg5[%c0_11, %c0_12] : memref<1x256xf32, #tpu.memory_space<vmem>>, vector<1x256xf32>
    %13 = vector.broadcast %12 : vector<1x256xf32> to vector<16x256xf32>
    %14 = arith.addf %11, %13 : vector<16x256xf32>
    %15 = arith.truncf %14 : vector<16x256xf32> to vector<16x256xbf16>
    %c0_13 = arith.constant 0 : index
    %c0_14 = arith.constant 0 : index
    %16 = vector.load %arg7[%c0_13, %c0_14] : memref<16x256xbf16, #tpu.memory_space<vmem>>, vector<16x256xbf16>
    tpu.vector_store %arg7[%c0_13, %c0_14], %15 {strides = array<i32>} : memref<16x256xbf16, #tpu.memory_space<vmem>>, vector<16x256xbf16>,
    return
  }
  func.func @transform_0(%arg0: i32) -> (i32, i32) {
    %c0_i32 = arith.constant 0 : i32
    %c0_i32_0 = arith.constant 0 : i32
    return %arg0, %c0_i32 : i32, i32
  }
  func.func @transform_1(%arg0: i32) -> (i32, i32) {
    %c0_i32 = arith.constant 0 : i32
    %c0_i32_0 = arith.constant 0 : i32
    %c0_i32_1 = arith.constant 0 : i32
    return %c0_i32, %c0_i32_0 : i32, i32
  }
  func.func @transform_2(%arg0: i32) -> (i32, i32) {
    %c0_i32 = arith.constant 0 : i32
    %c0_i32_0 = arith.constant 0 : i32
    %c0_i32_1 = arith.constant 0 : i32
    return %c0_i32, %c0_i32_0 : i32, i32
  }
  func.func @transform_3(%arg0: i32) -> (i32, i32) {
    %c0_i32 = arith.constant 0 : i32
    %c0_i32_0 = arith.constant 0 : i32
    %c0_i32_1 = arith.constant 0 : i32
    return %c0_i32, %c0_i32_0 : i32, i32
  }
  func.func @transform_4(%arg0: i32) -> (i32, i32) {
    %c0_i32 = arith.constant 0 : i32
    %c0_i32_0 = arith.constant 0 : i32
    %c0_i32_1 = arith.constant 0 : i32
    return %c0_i32, %c0_i32_0 : i32, i32
  }
  func.func @transform_5(%arg0: i32) -> (i32, i32) {
    %c0_i32 = arith.constant 0 : i32
    %c0_i32_0 = arith.constant 0 : i32
    return %arg0, %c0_i32 : i32, i32
  }
  func.func @transform_6(%arg0: i32) -> (i32, i32) {
    %c0_i32 = arith.constant 0 : i32
    %c0_i32_0 = arith.constant 0 : i32
    return %arg0, %c0_i32 : i32, i32
  }
}

</mosaic_0001>

<llo_original>
// kernel: tpu_custom_call.1
$region0: #{tpu_custom_call.1}
  #allocation0 [shape = 'u32[]', space=smem, size = 0x4, offset = 0x4, fixed_abs, tag = 'smem constant byte address 0x4 - core index']
  #allocation1 [shape = 'u32[144,128]{1,0:T(1,128)}', space=vmem, size = 0x12000, scoped, tag = 'internal scratch']
  %s0 = inlined_call_operand.hbm [shape: bf16[16,64], index: 0, kind: input, shape index: {}]
  %s1 = inlined_call_operand.hbm [shape: bf16[64,128], index: 1, kind: input, shape index: {}]
  %s2 = inlined_call_operand.vmem [shape: f32[1,128], index: 2, kind: input, shape index: {}]
  %s3 = inlined_call_operand.hbm [shape: bf16[128,256], index: 3, kind: input, shape index: {}]
  %s4 = inlined_call_operand.vmem [shape: f32[1,256], index: 4, kind: input, shape index: {}]
  %s5 = inlined_call_operand.hbm [shape: f32[16,128], index: 5, kind: output, shape index: {0}]
  %s6 = inlined_call_operand.hbm [shape: bf16[16,256], index: 6, kind: output, shape index: {1}]
  %7 = xla_tuple %s5, %s6
  %s8 = sld [smem:[#allocation0]]
  $region50: #{tpu_custom_call.1} parent=0
    _
  %s10 = ssub.s32 1, %s8
  %s11 = scalar_select 0, %s10, %s8
  $region1: #{tpu_custom_call.1} parent=0
    #allocation2 [shape = 'u8[4096]{0}', space=vmem, size = 0x1000, scoped, tag = 'input window, operand 0, single buffered']
    #allocation3 [shape = 's32[1]{0}', space=sflag, size = 0x4, scoped, tag = 'scoped memory for tpu_custom_call.1']
    #allocation4 [shape = 's32[1]{0}', space=sflag, size = 0x4, scoped, tag = 'scoped memory for tpu_custom_call.1']
    #allocation5 [shape = 'u8[16384]{0}', space=vmem, size = 0x4000, scoped, tag = 'input window, operand 1, single buffered']
    #allocation6 [shape = 's32[1]{0}', space=sflag, size = 0x4, scoped, tag = 'scoped memory for tpu_custom_call.1']
    #allocation7 [shape = 'u8[65536]{0}', space=vmem, size = 0x10000, scoped, tag = 'input window, operand 3, single buffered']
    #allocation8 [shape = 'u8[8192]{0}', space=vmem, size = 0x2000, scoped, tag = 'output window, operand 0, single buffered']
    #allocation9 [shape = 'u8[8192]{0}', space=vmem, size = 0x2000, scoped, tag = 'output window, operand 1, single buffered']
    #allocation10 [shape = 's32[1]{0}', space=sflag, size = 0x4, scoped, tag = 'scoped memory for tpu_custom_call.1']
    %12 = vsyncpa [#allocation3], 0
    %13 = vsyncpa [#allocation6], 0
    %14 = vsyncpa [#allocation4], 0
    %15 = vsyncpa [#allocation10], 0
    // Predicated region
    $region2: #{tpu_custom_call.1} parent=1 // pred_check
      _
    $region3: #{tpu_custom_call.1} parent=1 // pred_check_branch
      %17 = sbr.rel (0) target = $region5
    $region4: #{tpu_custom_call.1} parent=1 // pred_region
      %s19 = ssub.s32 128, 128
      %20 = vsyncadd [#allocation3], %s19
      %s21 = sshll.u32 [#allocation2], 4
      %s22 = int_to_ptr.vmem [resolvable:$true] %s21
      %27 = dma.hbm_to_vmem [thread:$0]  %s0, 128, %s22, [#allocation3], 64, 64, 4
    $region5: #{tpu_custom_call.1} parent=1 // pred_fallthru
      _
    // Predicated region
    $region6: #{tpu_custom_call.1} parent=1 // pred_check
      _
    $region7: #{tpu_custom_call.1} parent=1 // pred_check_branch
      %29 = sbr.rel (0) target = $region9
    $region8: #{tpu_custom_call.1} parent=1 // pred_region
      %s31 = ssub.s32 512, 512
      %32 = vsyncadd [#allocation6], %s31
      %s33 = sshll.u32 [#allocation5], 4
      %s34 = int_to_ptr.vmem [resolvable:$true] %s33
      %39 = dma.hbm_to_vmem [thread:$0]  %s1, 512, %s34, [#allocation6], 64, 64, 4
    $region9: #{tpu_custom_call.1} parent=1 // pred_fallthru
      _
    // Predicated region
    $region10: #{tpu_custom_call.1} parent=1 // pred_check
      _
    $region11: #{tpu_custom_call.1} parent=1 // pred_check_branch
      %41 = sbr.rel (0) target = $region13
    $region12: #{tpu_custom_call.1} parent=1 // pred_region
      _
    $region13: #{tpu_custom_call.1} parent=1 // pred_fallthru
      _
    // Predicated region
    $region14: #{tpu_custom_call.1} parent=1 // pred_check
      _
    $region15: #{tpu_custom_call.1} parent=1 // pred_check_branch
      %43 = sbr.rel (0) target = $region17
    $region16: #{tpu_custom_call.1} parent=1 // pred_region
      %s45 = ssub.s32 2048, 2048
      %46 = vsyncadd [#allocation6], %s45
      %s47 = sshll.u32 [#allocation7], 4
      %s48 = int_to_ptr.vmem [resolvable:$true] %s47
      %53 = dma.hbm_to_vmem [thread:$0]  %s3, 2048, %s48, [#allocation6], 128, 128, 8
    $region17: #{tpu_custom_call.1} parent=1 // pred_fallthru
      _
    // Predicated region
    $region18: #{tpu_custom_call.1} parent=1 // pred_check
      _
    $region19: #{tpu_custom_call.1} parent=1 // pred_check_branch
      %55 = sbr.rel (0) target = $region21
    $region20: #{tpu_custom_call.1} parent=1 // pred_region
      _
    $region21: #{tpu_custom_call.1} parent=1 // pred_fallthru
      _
    // Predicated region
    $region22: #{tpu_custom_call.1} parent=1 // pred_check
      _
    $region23: #{tpu_custom_call.1} parent=1 // pred_check_branch
      %57 = sbr.rel (0) target = $region25
    $region24: #{tpu_custom_call.1} parent=1 // pred_region
      %58 = dma.done [#allocation3], 128
    $region25: #{tpu_custom_call.1} parent=1 // pred_fallthru
      _
    // Predicated region
    $region26: #{tpu_custom_call.1} parent=1 // pred_check
      _
    $region27: #{tpu_custom_call.1} parent=1 // pred_check_branch
      %60 = sbr.rel (0) target = $region29
    $region28: #{tpu_custom_call.1} parent=1 // pred_region
      %61 = dma.done [#allocation6], 512
    $region29: #{tpu_custom_call.1} parent=1 // pred_fallthru
      _
    // Predicated region
    $region30: #{tpu_custom_call.1} parent=1 // pred_check
      _
    $region31: #{tpu_custom_call.1} parent=1 // pred_check_branch
      %63 = sbr.rel (0) target = $region33
    $region32: #{tpu_custom_call.1} parent=1 // pred_region
      %64 = dma.done [#allocation6], 2048
    $region33: #{tpu_custom_call.1} parent=1 // pred_fallthru
      _
    %v66 = vld [vmem:[#allocation2] sm:$0xf]
    %v67 = vld [vmem:[#allocation2 + $0x4] sm:$0xf]
    %v68 = vld [vmem:[#allocation5] sm:$0xf]
    %v69 = vld [vmem:[#allocation5 + $0x4] sm:$0xf]
    %v70 = vld [vmem:[#allocation5 + $0x8] sm:$0xf]
    %v71 = vld [vmem:[#allocation5 + $0xc] sm:$0xf]
    %v72 = vld [vmem:[#allocation5 + $0x10] sm:$0xf]
    %v73 = vld [vmem:[#allocation5 + $0x14] sm:$0xf]
    %v74 = vld [vmem:[#allocation5 + $0x18] sm:$0xf]
    %v75 = vld [vmem:[#allocation5 + $0x1c] sm:$0xf]
    %v76 = vld [vmem:[%s2] sm:$0x1]
    %v78 = vlaneseq
    %v79 = vshrl.u32 %v78, 7
    %v80 = vsub.s32 0, %v79
    %v81 = vrot.slane %v76, %v80
    %v85 = vunpack.c.l.b16 %v66
    %v86 = vunpack.c.l.b16 %v67
    %v87 = vpack.c.b16 %v86, %v85
    %v96 = vunpack.c.l.b16 %v68
    %v97 = vunpack.c.l.b16 %v69
    %v98 = vunpack.c.l.b16 %v70
    %v99 = vunpack.c.l.b16 %v71
    %v100 = vunpack.c.l.b16 %v72
    %v101 = vunpack.c.l.b16 %v73
    %v102 = vunpack.c.l.b16 %v74
    %v103 = vunpack.c.l.b16 %v75
    %v104 = vpack.c.b16 %v97, %v96
    %v105 = vpack.c.b16 %v99, %v98
    %v106 = vpack.c.b16 %v101, %v100
    %v107 = vpack.c.b16 %v103, %v102
    %vm112 = vcmask 523264
    %v114 = vsel %vm112, %v87, 0
    %116 = vmatprep.subr.bf16.mxu0 0
    %117 = vmatpush1.bf16.msra.mxu0 %v104
    %118 = vmatprep.subr.bf16.mxu0 0
    %119 = vmatpush1.bf16.msra.mxu0 %v105
    %120 = vmatprep.subr.bf16.mxu0 0
    %121 = vmatpush1.bf16.msra.mxu0 %v106
    %122 = vmatprep.subr.bf16.mxu0 0
    %123 = vmatpush1.bf16.msra.mxu0 %v107
    %124 = vmatprep.subr.bf16.mxu0 0
    %125 = vmatpush1.bf16.msra.mxu0 0
    %126 = vmatprep.subr.bf16.mxu0 0
    %127 = vmatpush1.bf16.msra.mxu0 0
    %128 = vmatprep.subr.bf16.mxu0 0
    %129 = vmatpush1.bf16.msra.mxu0 0
    %130 = vmatprep.subr.bf16.mxu0 0
    %131 = vmatpush1.bf16.msra.mxu0 0
    %132 = vmatprep.subr.bf16.mxu0 0
    %133 = vmatpush1.bf16.msra.mxu0 0
    %134 = vmatprep.subr.bf16.mxu0 0
    %135 = vmatpush1.bf16.msra.mxu0 0
    %136 = vmatprep.subr.bf16.mxu0 0
    %137 = vmatpush1.bf16.msra.mxu0 0
    %138 = vmatprep.subr.bf16.mxu0 0
    %139 = vmatpush1.bf16.msra.mxu0 0
    %140 = vmatprep.subr.bf16.mxu0 0
    %141 = vmatpush1.bf16.msra.mxu0 0
    %142 = vmatprep.subr.bf16.mxu0 0
    %143 = vmatpush1.bf16.msra.mxu0 0
    %144 = vmatprep.subr.bf16.mxu0 0
    %145 = vmatpush1.bf16.msra.mxu0 0
    %146 = vmatprep.subr.bf16.mxu0 0
    %147 = vmatpush1.bf16.msra.mxu0 0
    %148 = vmatprep.mubr.bf16.mxu0 0
    %149 = vmatmul.mubr.bf16.gmra.mrb[0].mxu0 %v114
    %v150 = vpop.f32.mrb[0].mxu0
    %v151 = vadd.f32 %v81, %v150
    %v152 = vpop.f32.mrb[0].mxu0
    %v153 = vpop.f32.mrb[0].mxu0
    %v154 = vadd.f32 %v81, %v153
    %v155 = vpop.f32.mrb[0].mxu0
    %156 = vdwg.mxu0
    %157 = vst [vmem:[#allocation8] sm:$0xff] %v151
    %158 = vst [vmem:[#allocation8 + $0x8] sm:$0xff] %v154
    %v159 = vmax.f32 %v151, 0.0
    %v160 = vmax.f32 %v154, 0.0
    %v161 = vpack.c.bf16 %v160, %v159
    %v162 = vld [vmem:[#allocation7] sm:$0xff]
    %v163 = vld [vmem:[#allocation7 + $0x8] sm:$0xff]
    %v164 = vld [vmem:[#allocation7 + $0x10] sm:$0xff]
    %v165 = vld [vmem:[#allocation7 + $0x18] sm:$0xff]
    %v166 = vld [vmem:[#allocation7 + $0x20] sm:$0xff]
    %v167 = vld [vmem:[#allocation7 + $0x28] sm:$0xff]
    %v168 = vld [vmem:[#allocation7 + $0x30] sm:$0xff]
    %v169 = vld [vmem:[#allocation7 + $0x38] sm:$0xff]
    %v170 = vld [vmem:[#allocation7 + $0x40] sm:$0xff]
    %v171 = vld [vmem:[#allocation7 + $0x48] sm:$0xff]
    %v172 = vld [vmem:[#allocation7 + $0x50] sm:$0xff]
    %v173 = vld [vmem:[#allocation7 + $0x58] sm:$0xff]
    %v174 = vld [vmem:[#allocation7 + $0x60] sm:$0xff]
    %v175 = vld [vmem:[#allocation7 + $0x68] sm:$0xff]
    %v176 = vld [vmem:[#allocation7 + $0x70] sm:$0xff]
    %v177 = vld [vmem:[#allocation7 + $0x78] sm:$0xff]
    %v178 = vld [vmem:[%s4] sm:$0x3]
    %v180 = vlaneseq
    %v181 = vshrl.u32 %v180, 7
    %v182 = vsub.s32 0, %v181
    %v183 = vrot.slane %v178, %v182
    %v184 = vlaneseq
    %v185 = vshrl.u32 %v184, 7
    %v186 = vsub.s32 1, %v185
    %v187 = vrot.slane %v178, %v186
    %v206 = vunpack.c.l.b16 %v162
    %v207 = vunpack.c.h.b16 %v162
    %v208 = vunpack.c.l.b16 %v163
    %v209 = vunpack.c.h.b16 %v163
    %v210 = vunpack.c.l.b16 %v164
    %v211 = vunpack.c.h.b16 %v164
    %v212 = vunpack.c.l.b16 %v165
    %v213 = vunpack.c.h.b16 %v165
    %v214 = vunpack.c.l.b16 %v166
    %v215 = vunpack.c.h.b16 %v166
    %v216 = vunpack.c.l.b16 %v167
    %v217 = vunpack.c.h.b16 %v167
    %v218 = vunpack.c.l.b16 %v168
    %v219 = vunpack.c.h.b16 %v168
    %v220 = vunpack.c.l.b16 %v169
    %v221 = vunpack.c.h.b16 %v169
    %v222 = vunpack.c.l.b16 %v170
    %v223 = vunpack.c.h.b16 %v170
    %v224 = vunpack.c.l.b16 %v171
    %v225 = vunpack.c.h.b16 %v171
    %v226 = vunpack.c.l.b16 %v172
    %v227 = vunpack.c.h.b16 %v172
    %v228 = vunpack.c.l.b16 %v173
    %v229 = vunpack.c.h.b16 %v173
    %v230 = vunpack.c.l.b16 %v174
    %v231 = vunpack.c.h.b16 %v174
    %v232 = vunpack.c.l.b16 %v175
    %v233 = vunpack.c.h.b16 %v175
    %v234 = vunpack.c.l.b16 %v176
    %v235 = vunpack.c.h.b16 %v176
    %v236 = vunpack.c.l.b16 %v177
    %v237 = vunpack.c.h.b16 %v177
    %v238 = vpack.c.b16 %v208, %v206
    %v239 = vpack.c.b16 %v209, %v207
    %v240 = vpack.c.b16 %v212, %v210
    %v241 = vpack.c.b16 %v213, %v211
    %v242 = vpack.c.b16 %v216, %v214
    %v243 = vpack.c.b16 %v217, %v215
    %v244 = vpack.c.b16 %v220, %v218
    %v245 = vpack.c.b16 %v221, %v219
    %v246 = vpack.c.b16 %v224, %v222
    %v247 = vpack.c.b16 %v225, %v223
    %v248 = vpack.c.b16 %v228, %v226
    %v249 = vpack.c.b16 %v229, %v227
    %v250 = vpack.c.b16 %v232, %v230
    %v251 = vpack.c.b16 %v233, %v231
    %v252 = vpack.c.b16 %v236, %v234
    %v253 = vpack.c.b16 %v237, %v235
    %270 = vmatprep.subr.bf16.mxu0 %v239
    %271 = vmatpush1.bf16.msra.mxu0 %v238
    %272 = vmatprep.subr.bf16.mxu0 %v241
    %273 = vmatpush1.bf16.msra.mxu0 %v240
    %274 = vmatprep.subr.bf16.mxu0 %v243
    %275 = vmatpush1.bf16.msra.mxu0 %v242
    %276 = vmatprep.subr.bf16.mxu0 %v245
    %277 = vmatpush1.bf16.msra.mxu0 %v244
    %278 = vmatprep.subr.bf16.mxu0 %v247
    %279 = vmatpush1.bf16.msra.mxu0 %v246
    %280 = vmatprep.subr.bf16.mxu0 %v249
    %281 = vmatpush1.bf16.msra.mxu0 %v248
    %282 = vmatprep.subr.bf16.mxu0 %v251
    %283 = vmatpush1.bf16.msra.mxu0 %v250
    %284 = vmatprep.subr.bf16.mxu0 %v253
    %285 = vmatpush1.bf16.msra.mxu0 %v252
    %286 = vmatprep.subr.bf16.mxu0 0
    %287 = vmatpush1.bf16.msra.mxu0 0
    %288 = vmatprep.subr.bf16.mxu0 0
    %289 = vmatpush1.bf16.msra.mxu0 0
    %290 = vmatprep.subr.bf16.mxu0 0
    %291 = vmatpush1.bf16.msra.mxu0 0
    %292 = vmatprep.subr.bf16.mxu0 0
    %293 = vmatpush1.bf16.msra.mxu0 0
    %294 = vmatprep.subr.bf16.mxu0 0
    %295 = vmatpush1.bf16.msra.mxu0 0
    %296 = vmatprep.subr.bf16.mxu0 0
    %297 = vmatpush1.bf16.msra.mxu0 0
    %298 = vmatprep.subr.bf16.mxu0 0
    %299 = vmatpush1.bf16.msra.mxu0 0
    %300 = vmatprep.subr.bf16.mxu0 0
    %301 = vmatpush1.bf16.msra.mxu0 0
    %302 = vmatprep.mubr.bf16.mxu0 0
    %303 = vmatmul.mubr.bf16.gmra.mrb[0].mxu0 %v161
    %v304 = vpop.f32.mrb[0].mxu0
    %v305 = vadd.f32 %v183, %v304
    %v306 = vpop.f32.mrb[0].mxu0
    %v307 = vadd.f32 %v187, %v306
    %v308 = vpop.f32.mrb[0].mxu0
    %v309 = vadd.f32 %v183, %v308
    %v310 = vpop.f32.mrb[0].mxu0
    %v311 = vadd.f32 %v187, %v310
    %312 = vdwg.mxu0
    %v313 = vpack.c.bf16 %v309, %v305
    %v314 = vpack.c.bf16 %v311, %v307
    %v317 = vunpack.c.l.b16 %v313
    %v318 = vunpack.c.l.b16 %v314
    %v319 = vunpack.c.h.b16 %v313
    %v320 = vunpack.c.h.b16 %v314
    %v321 = vpack.c.b16 %v318, %v317
    %v322 = vpack.c.b16 %v320, %v319
    %325 = vst [vmem:[#allocation9] sm:$0xff] %v321
    %326 = vst [vmem:[#allocation9 + $0x8] sm:$0xff] %v322
    // Predicated region
    $region34: #{tpu_custom_call.1} parent=1 // pred_check
      _
    $region35: #{tpu_custom_call.1} parent=1 // pred_check_branch
      %328 = sbr.rel (0) target = $region37
    $region36: #{tpu_custom_call.1} parent=1 // pred_region
      %s330 = ssub.s32 256, 256
      %331 = vsyncadd [#allocation4], %s330
      %s332 = sshll.u32 [#allocation8], 4
      %s333 = int_to_ptr.vmem [resolvable:$true] %s332
      %338 = dma.vmem_to_hbm [thread:$0]  %s333, 256, %s5, [#allocation4], 128, 128, 8
    $region37: #{tpu_custom_call.1} parent=1 // pred_fallthru
      _
    // Predicated region
    $region38: #{tpu_custom_call.1} parent=1 // pred_check
      _
    $region39: #{tpu_custom_call.1} parent=1 // pred_check_branch
      %340 = sbr.rel (0) target = $region41
    $region40: #{tpu_custom_call.1} parent=1 // pred_region
      %s342 = ssub.s32 256, 256
      %343 = vsyncadd [#allocation10], %s342
      %s344 = sshll.u32 [#allocation9], 4
      %s345 = int_to_ptr.vmem [resolvable:$true] %s344
      %350 = dma.vmem_to_hbm [thread:$0]  %s345, 256, %s6, [#allocation10], 128, 128, 8
    $region41: #{tpu_custom_call.1} parent=1 // pred_fallthru
      _
    // Predicated region
    $region42: #{tpu_custom_call.1} parent=1 // pred_check
      _
    $region43: #{tpu_custom_call.1} parent=1 // pred_check_branch
      %352 = sbr.rel (0) target = $region45
    $region44: #{tpu_custom_call.1} parent=1 // pred_region
      %353 = dma.done [#allocation4], 256
    $region45: #{tpu_custom_call.1} parent=1 // pred_fallthru
      _
    // Predicated region
    $region46: #{tpu_custom_call.1} parent=1 // pred_check
      _
    $region47: #{tpu_custom_call.1} parent=1 // pred_check_branch
      %355 = sbr.rel (0) target = $region49
    $region48: #{tpu_custom_call.1} parent=1 // pred_region
      %356 = dma.done [#allocation10], 256
    $region49: #{tpu_custom_call.1} parent=1 // pred_fallthru
      _
    %357 = vsyncpa [#allocation3], 1
    %358 = vsyncpa [#allocation6], 1
    %359 = vsyncpa [#allocation4], 1
    %360 = vsyncpa [#allocation10], 1

</llo_original>
